<compile_context>
chip_gen: v6e
topology: v6e:2x2x1
jax: 0.10.0
libtpu: 0.0.40
codegen_flags: <defaults>
</compile_context>

<pallas_src>
import jax
import jax.numpy as jnp
from jax import lax
from jax.experimental import pallas as pl
from jax.experimental.pallas import tpu as pltpu

_IN, _HID, _OUT = 6, 6, 2
_MISH_SAT = 20.0          # beyond this, tanh(softplus(h)) == 1.0 in f32
TILE_B = 32768            # batch-lane tile (multiple of 128)

# dot_general dimension numbers
_NT = (((1,), (1,)), ((), ()))   # contract lhs minor with rhs minor (rhs "transposed")
_NN = (((1,), (0,)), ((), ()))   # standard matmul


def _mlp_kernel(x_ref, w1_ref, b1_ref, w2_ref, b2_ref, o_ref):
    # x_ref : (tb, 6)   batch-major input tile
    # w1_ref: (6, 6)    torch (out, in) layout, resident
    # b1_ref: (6, tb)   bias pre-broadcast across lanes, resident
    # w2_ref: (2, 6)    resident
    # b2_ref: (2, tb)   resident
    # o_ref : (2, tb)   lane-dense output tile
    x = x_ref[...]

    # ---- Linear(6,6) on the MXU (rhs-transposed contraction).  Produces the
    # lane-dense (6, tb) hidden state directly from the batch-major tile, so
    # no explicit transpose of x is needed anywhere.
    h = lax.dot_general(w1_ref[...], x, _NT, preferred_element_type=jnp.float32)
    h = h + b1_ref[...]

    # ---- Mish: h * tanh(softplus(h)) = h * u / (u + 2),  u = e^h (e^h + 2) ----
    hc = jnp.minimum(h, _MISH_SAT)                 # clamp -> no inf inside exp
    t = jnp.exp(hc)
    u = t * (t + 2.0)
    mish = h * u * pl.reciprocal(u + 2.0, approx=True)
    h = jnp.where(h > _MISH_SAT, h, mish)          # saturated branch: mish(h) -> h

    # ---- Linear(6,2) on the MXU ---------------------------------------------
    y = lax.dot_general(w2_ref[...], h, _NN, preferred_element_type=jnp.float32)
    y = y + b2_ref[...]

    # ---- numerically stable Sigmoid (single EUP exp + approx reciprocal) -----
    z = jnp.exp(-jnp.abs(y))
    r = pl.reciprocal(1.0 + z, approx=True)
    o_ref[...] = jnp.where(y >= 0.0, r, z * r)


def _round_up(n, m):
    return ((n + m - 1) // m) * m


def _forward_impl(x, w1, b1, w2, b2):
    """x: (B, 6); w1: (6, 6); b1: (6,); w2: (2, 6); b2: (2,)  (torch layouts).

    Returns sigmoid(mish(x @ w1.T + b1) @ w2.T + b2) with shape (B, 2).
    """
    B = x.shape[0]
    x = x.astype(jnp.float32)

    # Tile sizing: large lane-dense tiles; guarantee >=2 grid steps when there
    # is enough batch so v7x megacore sharding ("parallel") has work per core.
    bp = _round_up(max(B, 1), 128)
    n_steps = pl.cdiv(bp, TILE_B)
    if n_steps < 2 and bp >= 256:
        n_steps = 2
    tb = _round_up(pl.cdiv(bp, n_steps), 128)
    grid = pl.cdiv(B, tb)

    # Biases pre-broadcast once (tiny, resident in VMEM) -> in-kernel bias add
    # is a pure vld+vadd, no per-step broadcast lowering on the VALU.
    b1b = jnp.broadcast_to(b1.astype(jnp.float32).reshape(_HID, 1), (_HID, tb))
    b2b = jnp.broadcast_to(b2.astype(jnp.float32).reshape(_OUT, 1), (_OUT, tb))

    out_t = pl.pallas_call(
        _mlp_kernel,
        out_shape=jax.ShapeDtypeStruct((_OUT, B), jnp.float32),
        grid_spec=pltpu.PrefetchScalarGridSpec(
            num_scalar_prefetch=0,
            grid=(grid,),
            in_specs=[
                pl.BlockSpec((tb, _IN), lambda i: (i, 0)),      # x batch tile
                pl.BlockSpec((_HID, _IN), lambda i: (0, 0)),    # w1 (resident)
                pl.BlockSpec((_HID, tb), lambda i: (0, 0)),     # b1 broadcast (resident)
                pl.BlockSpec((_OUT, _HID), lambda i: (0, 0)),   # w2 (resident)
                pl.BlockSpec((_OUT, tb), lambda i: (0, 0)),     # b2 broadcast (resident)
            ],
            out_specs=pl.BlockSpec((_OUT, tb), lambda i: (0, i)),
        ),
        compiler_params=pltpu.CompilerParams(
            dimension_semantics=("parallel",),   # megacore sharding on v7x
        ),
    )(x, w1.astype(jnp.float32), b1b, w2.astype(jnp.float32), b2b)

    # Consumers that can accept the lane-dense (2, B) layout should take out_t
    # directly and drop this final transpose (review item: ~5-10% for large B).
    return out_t.T                                               # (B, 2)


robot_nn_forward = jax.jit(_forward_impl)


def init_params(key):
    """PyTorch-style Linear init; weights in torch (out, in) layout, biases 1-D."""
    k1, k2, k3, k4 = jax.random.split(key, 4)
    bound1 = 1.0 / jnp.sqrt(float(_IN))
    bound2 = 1.0 / jnp.sqrt(float(_HID))
    w1 = jax.random.uniform(k1, (_HID, _IN), jnp.float32, -bound1, bound1)
    b1 = jax.random.uniform(k2, (_HID,), jnp.float32, -bound1, bound1)
    w2 = jax.random.uniform(k3, (_OUT, _HID), jnp.float32, -bound2, bound2)
    b2 = jax.random.uniform(k4, (_OUT,), jnp.float32, -bound2, bound2)
    return w1, b1, w2, b2


def reference_forward(x, w1, b1, w2, b2):
    """Exact-f32 reference (no matmul-precision ambiguity: explicit mul+sum)."""
    x = x.astype(jnp.float32)
    h = jnp.sum(x[:, None, :] * w1[None, :, :], axis=-1) + b1
    h = h * jnp.tanh(jax.nn.softplus(h))           # Mish (stable softplus)
    y = jnp.sum(h[:, None, :] * w2[None, :, :], axis=-1) + b2
    return jax.nn.sigmoid(y)


if __name__ == "__main__":
    key = jax.random.PRNGKey(0)
    kx, kp = jax.random.split(key)

    B = 8
    x = jax.random.normal(kx, (B, _IN), dtype=jnp.float32)
    w1, b1, w2, b2 = init_params(kp)

    out = jax.block_until_ready(robot_nn_forward(x, w1, b1, w2, b2))
    ref = reference_forward(x, w1, b1, w2, b2)

    assert out.shape == (B, _OUT)
    # approx-reciprocal EUP path -> slightly loose tolerance
    assert jnp.allclose(out, ref, atol=5e-3, rtol=5e-3), "mismatch vs reference"

    print("KERNEL_OK")
</pallas_src>

<mosaic_0001>
module attributes {stable_mosaic.version = 11 : i64} {
  func.func @_mlp_kernel(%arg0: i32, %arg1: memref<128x6xf32, #tpu.memory_space<vmem>>, %arg2: memref<6x6xf32, #tpu.memory_space<vmem>>, %arg3: memref<6x128xf32, #tpu.memory_space<vmem>>, %arg4: memref<2x6xf32, #tpu.memory_space<vmem>>, %arg5: memref<2x128xf32, #tpu.memory_space<vmem>>, %arg6: memref<2x128xf32, #tpu.memory_space<vmem>>) attributes {dimension_semantics = [#tpu.dimension_semantics<parallel>], iteration_bounds = array<i64: 1>, scalar_prefetch = 0 : i64, scratch_operands = 0 : i64, tpu.core_type = #tpu.core_type<tc>, window_params = [{transform_indices = @transform_0, window_bounds = array<i64: 128, 6>}, {pipeline_mode = #tpu.pipeline_mode<synchronous>, transform_indices = @transform_1, window_bounds = array<i64: 6, 6>}, {pipeline_mode = #tpu.pipeline_mode<synchronous>, transform_indices = @transform_2, window_bounds = array<i64: 6, 128>}, {pipeline_mode = #tpu.pipeline_mode<synchronous>, transform_indices = @transform_3, window_bounds = array<i64: 2, 6>}, {pipeline_mode = #tpu.pipeline_mode<synchronous>, transform_indices = @transform_4, window_bounds = array<i64: 2, 128>}, {transform_indices = @transform_5, window_bounds = array<i64: 2, 128>}]} {
    %c0 = arith.constant 0 : index
    %c0_0 = arith.constant 0 : index
    %0 = vector.load %arg1[%c0, %c0_0] : memref<128x6xf32, #tpu.memory_space<vmem>>, vector<128x6xf32>
    %c0_1 = arith.constant 0 : index
    %c0_2 = arith.constant 0 : index
    %1 = vector.load %arg2[%c0_1, %c0_2] : memref<6x6xf32, #tpu.memory_space<vmem>>, vector<6x6xf32>
    %cst = arith.constant dense<0.000000e+00> : vector<6x128xf32>
    %2 = tpu.matmul %1, %0, %cst {dimension_numbers = #tpu.dot_dimension_numbers<[1], [1], [0], [0], [0, 0, 1, 0], [], []>} : vector<6x6xf32>, vector<128x6xf32>, vector<6x128xf32> -> vector<6x128xf32>
    %c0_3 = arith.constant 0 : index
    %c0_4 = arith.constant 0 : index
    %3 = vector.load %arg3[%c0_3, %c0_4] : memref<6x128xf32, #tpu.memory_space<vmem>>, vector<6x128xf32>
    %4 = arith.addf %2, %3 : vector<6x128xf32>
    %cst_5 = arith.constant 2.000000e+01 : f32
    %5 = vector.broadcast %cst_5 : f32 to vector<6x128xf32>
    %6 = arith.minimumf %4, %5 : vector<6x128xf32>
    %7 = math.exp %6 : vector<6x128xf32>
    %cst_6 = arith.constant 2.000000e+00 : f32
    %8 = vector.broadcast %cst_6 : f32 to vector<6x128xf32>
    %9 = arith.addf %7, %8 : vector<6x128xf32>
    %10 = arith.mulf %7, %9 : vector<6x128xf32>
    %11 = arith.mulf %4, %10 : vector<6x128xf32>
    %cst_7 = arith.constant 2.000000e+00 : f32
    %12 = vector.broadcast %cst_7 : f32 to vector<6x128xf32>
    %13 = arith.addf %10, %12 : vector<6x128xf32>
    %14 = tpu.reciprocal %13 {approx = true} : vector<6x128xf32> -> vector<6x128xf32>
    %15 = arith.mulf %11, %14 : vector<6x128xf32>
    %cst_8 = arith.constant 2.000000e+01 : f32
    %16 = vector.broadcast %cst_8 : f32 to vector<6x128xf32>
    %17 = arith.cmpf ogt, %4, %16 : vector<6x128xf32>
    %18 = arith.select %17, %4, %15 : vector<6x128xi1>, vector<6x128xf32>
    %c0_9 = arith.constant 0 : index
    %c0_10 = arith.constant 0 : index
    %19 = vector.load %arg4[%c0_9, %c0_10] : memref<2x6xf32, #tpu.memory_space<vmem>>, vector<2x6xf32>
    %cst_11 = arith.constant dense<0.000000e+00> : vector<2x128xf32>
    %20 = tpu.matmul %19, %18, %cst_11 {dimension_numbers = #tpu.dot_dimension_numbers<[1], [0], [0], [1], [0, 0, 1, 1], [], []>} : vector<2x6xf32>, vector<6x128xf32>, vector<2x128xf32> -> vector<2x128xf32>
    %c0_12 = arith.constant 0 : index
    %c0_13 = arith.constant 0 : index
    %21 = vector.load %arg5[%c0_12, %c0_13] : memref<2x128xf32, #tpu.memory_space<vmem>>, vector<2x128xf32>
    %22 = arith.addf %20, %21 : vector<2x128xf32>
    %23 = math.absf %22 : vector<2x128xf32>
    %cst_14 = arith.constant 0.000000e+00 : f32
    %24 = vector.broadcast %cst_14 : f32 to vector<2x128xf32>
    %25 = arith.subf %24, %23 : vector<2x128xf32>
    %26 = math.exp %25 : vector<2x128xf32>
    %cst_15 = arith.constant 1.000000e+00 : f32
    %27 = vector.broadcast %cst_15 : f32 to vector<2x128xf32>
    %28 = arith.addf %27, %26 : vector<2x128xf32>
    %29 = tpu.reciprocal %28 {approx = true} : vector<2x128xf32> -> vector<2x128xf32>
    %cst_16 = arith.constant 0.000000e+00 : f32
    %30 = vector.broadcast %cst_16 : f32 to vector<2x128xf32>
    %31 = arith.cmpf oge, %22, %30 : vector<2x128xf32>
    %32 = arith.mulf %26, %29 : vector<2x128xf32>
    %33 = arith.select %31, %29, %32 : vector<2x128xi1>, vector<2x128xf32>
    %c0_17 = arith.constant 0 : index
    %c0_18 = arith.constant 0 : index
    %34 = vector.load %arg6[%c0_17, %c0_18] : memref<2x128xf32, #tpu.memory_space<vmem>>, vector<2x128xf32>
    tpu.vector_store %arg6[%c0_17, %c0_18], %33 {strides = array<i32>} : memref<2x128xf32, #tpu.memory_space<vmem>>, vector<2x128xf32>,
    return
  }
  func.func @transform_0(%arg0: i32) -> (i32, i32) {
    %c0_i32 = arith.constant 0 : i32
    %c0_i32_0 = arith.constant 0 : i32
    return %arg0, %c0_i32 : i32, i32
  }
  func.func @transform_1(%arg0: i32) -> (i32, i32) {
    %c0_i32 = arith.constant 0 : i32
    %c0_i32_0 = arith.constant 0 : i32
    %c0_i32_1 = arith.constant 0 : i32
    return %c0_i32, %c0_i32_0 : i32, i32
  }
  func.func @transform_2(%arg0: i32) -> (i32, i32) {
    %c0_i32 = arith.constant 0 : i32
    %c0_i32_0 = arith.constant 0 : i32
    %c0_i32_1 = arith.constant 0 : i32
    return %c0_i32, %c0_i32_0 : i32, i32
  }
  func.func @transform_3(%arg0: i32) -> (i32, i32) {
    %c0_i32 = arith.constant 0 : i32
    %c0_i32_0 = arith.constant 0 : i32
    %c0_i32_1 = arith.constant 0 : i32
    return %c0_i32, %c0_i32_0 : i32, i32
  }
  func.func @transform_4(%arg0: i32) -> (i32, i32) {
    %c0_i32 = arith.constant 0 : i32
    %c0_i32_0 = arith.constant 0 : i32
    %c0_i32_1 = arith.constant 0 : i32
    return %c0_i32, %c0_i32_0 : i32, i32
  }
  func.func @transform_5(%arg0: i32) -> (i32, i32) {
    %c0_i32 = arith.constant 0 : i32
    %c0_i32_0 = arith.constant 0 : i32
    return %c0_i32, %arg0 : i32, i32
  }
}

</mosaic_0001>

<llo_original>
// kernel: _forward_impl.1
$region0: #{_forward_impl.1}
  #allocation0 [shape = 'u32[]', space=smem, size = 0x4, offset = 0x4, fixed_abs, tag = 'smem constant byte address 0x4 - core index']
  #allocation1 [shape = 'u32[144,128]{1,0:T(1,128)}', space=vmem, size = 0x12000, scoped, tag = 'internal scratch']
  %s0 = inlined_call_operand.vmem [shape: f32[8,6], index: 0, kind: input, shape index: {}]
  %s1 = inlined_call_operand.hbm [shape: f32[6,6], index: 1, kind: input, shape index: {}]
  %s2 = inlined_call_operand.vmem [shape: f32[6,128], index: 2, kind: input, shape index: {}]
  %s3 = inlined_call_operand.vmem [shape: f32[2,6], index: 3, kind: input, shape index: {}]
  %s4 = inlined_call_operand.vmem [shape: f32[2,128], index: 4, kind: input, shape index: {}]
  %s5 = inlined_call_operand.hbm [shape: f32[2,8], index: 5, kind: output, shape index: {}]
  %s6 = sld [smem:[#allocation0]]
  $region34: #{_forward_impl.1} parent=0
    _
  %s8 = ssub.s32 1, %s6
  %s9 = scalar_select 0, %s8, %s6
  $region1: #{_forward_impl.1} parent=0
    #allocation2 [shape = 'u8[4096]{0}', space=vmem, size = 0x1000, scoped, tag = 'input window, operand 1, single buffered']
    #allocation3 [shape = 's32[1]{0}', space=sflag, size = 0x4, scoped, tag = 'scoped memory for _forward_impl.1']
    #allocation4 [shape = 's32[1]{0}', space=sflag, size = 0x4, scoped, tag = 'scoped memory for _forward_impl.1']
    #allocation5 [shape = 'u8[1024]{0}', space=vmem, size = 0x400, scoped, tag = 'output window, operand 0, single buffered']
    %10 = vsyncpa [#allocation3], 0
    %11 = vsyncpa [#allocation4], 0
    // Predicated region
    $region2: #{_forward_impl.1} parent=1 // pred_check
      _
    $region3: #{_forward_impl.1} parent=1 // pred_check_branch
      %13 = sbr.rel (0) target = $region5
    $region4: #{_forward_impl.1} parent=1 // pred_region
      _
    $region5: #{_forward_impl.1} parent=1 // pred_fallthru
      _
    // Predicated region
    $region6: #{_forward_impl.1} parent=1 // pred_check
      _
    $region7: #{_forward_impl.1} parent=1 // pred_check_branch
      %15 = sbr.rel (0) target = $region9
    $region8: #{_forward_impl.1} parent=1 // pred_region
      %s17 = ssub.s32 128, 128
      %18 = vsyncadd [#allocation3], %s17
      %s20 = sshll.u32 [#allocation2], 4
      %s21 = int_to_ptr.vmem [resolvable:$true] %s20
      %23 = dma.hbm_to_vmem [thread:$0]  %s1, 128, %s21, [#allocation3]
    $region9: #{_forward_impl.1} parent=1 // pred_fallthru
      _
    // Predicated region
    $region10: #{_forward_impl.1} parent=1 // pred_check
      _
    $region11: #{_forward_impl.1} parent=1 // pred_check_branch
      %25 = sbr.rel (0) target = $region13
    $region12: #{_forward_impl.1} parent=1 // pred_region
      _
    $region13: #{_forward_impl.1} parent=1 // pred_fallthru
      _
    // Predicated region
    $region14: #{_forward_impl.1} parent=1 // pred_check
      _
    $region15: #{_forward_impl.1} parent=1 // pred_check_branch
      %27 = sbr.rel (0) target = $region17
    $region16: #{_forward_impl.1} parent=1 // pred_region
      _
    $region17: #{_forward_impl.1} parent=1 // pred_fallthru
      _
    // Predicated region
    $region18: #{_forward_impl.1} parent=1 // pred_check
      _
    $region19: #{_forward_impl.1} parent=1 // pred_check_branch
      %29 = sbr.rel (0) target = $region21
    $region20: #{_forward_impl.1} parent=1 // pred_region
      _
    $region21: #{_forward_impl.1} parent=1 // pred_fallthru
      _
    // Predicated region
    $region22: #{_forward_impl.1} parent=1 // pred_check
      _
    $region23: #{_forward_impl.1} parent=1 // pred_check_branch
      %31 = sbr.rel (0) target = $region25
    $region24: #{_forward_impl.1} parent=1 // pred_region
      %32 = dma.done [#allocation3], 128
    $region25: #{_forward_impl.1} parent=1 // pred_fallthru
      _
    %v33 = vld [vmem:[%s0] sm:$0xff]
    %v34 = vld [vmem:[%s0 + $0x8] sm:$0xff]
    %v35 = vld [vmem:[%s0 + $0x10] sm:$0xff]
    %v36 = vld [vmem:[%s0 + $0x18] sm:$0xff]
    %v37 = vld [vmem:[%s0 + $0x20] sm:$0xff]
    %v38 = vld [vmem:[%s0 + $0x28] sm:$0xff]
    %v39 = vld [vmem:[%s0 + $0x30] sm:$0xff]
    %v40 = vld [vmem:[%s0 + $0x38] sm:$0xff]
    %v41 = vld [vmem:[%s0 + $0x40] sm:$0xff]
    %v42 = vld [vmem:[%s0 + $0x48] sm:$0xff]
    %v43 = vld [vmem:[%s0 + $0x50] sm:$0xff]
    %v44 = vld [vmem:[%s0 + $0x58] sm:$0xff]
    %v45 = vld [vmem:[%s0 + $0x60] sm:$0xff]
    %v46 = vld [vmem:[%s0 + $0x68] sm:$0xff]
    %v47 = vld [vmem:[%s0 + $0x70] sm:$0xff]
    %v48 = vld [vmem:[%s0 + $0x78] sm:$0xff]
    %v49 = vld [vmem:[#allocation2] sm:$0x3f]
    %v50 = vld [vmem:[%s2] sm:$0x3f]
    %vm51 = vcmask 48128
    %v53 = vsel %vm51, %v49, 0
    %v56 = vsel %vm51, %v33, 0
    %v59 = vsel %vm51, %v34, 0
    %v62 = vsel %vm51, %v35, 0
    %v65 = vsel %vm51, %v36, 0
    %v68 = vsel %vm51, %v37, 0
    %v71 = vsel %vm51, %v38, 0
    %v74 = vsel %vm51, %v39, 0
    %v77 = vsel %vm51, %v40, 0
    %v80 = vsel %vm51, %v41, 0
    %v83 = vsel %vm51, %v42, 0
    %v86 = vsel %vm51, %v43, 0
    %v89 = vsel %vm51, %v44, 0
    %v92 = vsel %vm51, %v45, 0
    %v95 = vsel %vm51, %v46, 0
    %v98 = vsel %vm51, %v47, 0
    %v101 = vsel %vm51, %v48, 0
    %103 = vmatprep.subr.mxu0 0.0
    %104 = vmatpush1.xpose.msra.mxu0 %v101
    %105 = vmatprep.subr.mxu0 0.0
    %106 = vmatpush1.xpose.msra.mxu0 %v98
    %107 = vmatprep.subr.mxu0 0.0
    %108 = vmatpush1.xpose.msra.mxu0 %v95
    %109 = vmatprep.subr.mxu0 0.0
    %110 = vmatpush1.xpose.msra.mxu0 %v92
    %111 = vmatprep.subr.mxu0 0.0
    %112 = vmatpush1.xpose.msra.mxu0 %v89
    %113 = vmatprep.subr.mxu0 0.0
    %114 = vmatpush1.xpose.msra.mxu0 %v86
    %115 = vmatprep.subr.mxu0 0.0
    %116 = vmatpush1.xpose.msra.mxu0 %v83
    %117 = vmatprep.subr.mxu0 0.0
    %118 = vmatpush1.xpose.msra.mxu0 %v80
    %119 = vmatprep.subr.mxu0 0.0
    %120 = vmatpush1.xpose.msra.mxu0 %v77
    %121 = vmatprep.subr.mxu0 0.0
    %122 = vmatpush1.xpose.msra.mxu0 %v74
    %123 = vmatprep.subr.mxu0 0.0
    %124 = vmatpush1.xpose.msra.mxu0 %v71
    %125 = vmatprep.subr.mxu0 0.0
    %126 = vmatpush1.xpose.msra.mxu0 %v68
    %127 = vmatprep.subr.mxu0 0.0
    %128 = vmatpush1.xpose.msra.mxu0 %v65
    %129 = vmatprep.subr.mxu0 0.0
    %130 = vmatpush1.xpose.msra.mxu0 %v62
    %131 = vmatprep.subr.mxu0 0.0
    %132 = vmatpush1.xpose.msra.mxu0 %v59
    %133 = vmatprep.subr.mxu0 0.0
    %134 = vmatpush1.xpose.msra.mxu0 %v56
    %135 = vmatprep.subr.mxu0 0.0
    %136 = vmatpush2.xpose.msra.mxu0 0.0
    %137 = vmatprep.subr.mxu0 0.0
    %138 = vmatpush2.xpose.msra.mxu0 0.0
    %139 = vmatprep.subr.mxu0 0.0
    %140 = vmatpush2.xpose.msra.mxu0 0.0
    %141 = vmatprep.subr.mxu0 0.0
    %142 = vmatpush2.xpose.msra.mxu0 0.0
    %143 = vmatprep.subr.mxu0 0.0
    %144 = vmatpush2.xpose.msra.mxu0 0.0
    %145 = vmatprep.subr.mxu0 0.0
    %146 = vmatpush2.xpose.msra.mxu0 0.0
    %147 = vmatprep.subr.mxu0 0.0
    %148 = vmatpush2.xpose.msra.mxu0 0.0
    %149 = vmatprep.subr.mxu0 0.0
    %150 = vmatpush2.xpose.msra.mxu0 0.0
    %151 = vmatprep.subr.mxu0 0.0
    %152 = vmatpush2.xpose.msra.mxu0 0.0
    %153 = vmatprep.subr.mxu0 0.0
    %154 = vmatpush2.xpose.msra.mxu0 0.0
    %155 = vmatprep.subr.mxu0 0.0
    %156 = vmatpush2.xpose.msra.mxu0 0.0
    %157 = vmatprep.subr.mxu0 0.0
    %158 = vmatpush2.xpose.msra.mxu0 0.0
    %159 = vmatprep.subr.mxu0 0.0
    %160 = vmatpush2.xpose.msra.mxu0 0.0
    %161 = vmatprep.subr.mxu0 0.0
    %162 = vmatpush2.xpose.msra.mxu0 0.0
    %163 = vmatprep.subr.mxu0 0.0
    %164 = vmatpush2.xpose.msra.mxu0 0.0
    %165 = vmatprep.subr.mxu0 0.0
    %166 = vmatpush2.xpose.msra.mxu0 0.0
    %167 = vmatprep.mubr.f32.mxu0 0.0
    %168 = vmatmul.mubr.f32.gmra.mxu0 %v53
    %v169 = vpop.f32.mrf.mxu0
    %v170 = vadd.f32 %v50, %v169
    %v171 = vpop.f32.mrf.mxu0
    %172 = vdwg.mxu0
    %v173 = vmin.f32 %v170, 20.0
    %v174 = vmul.f32 %v173, 1.442695
    %v175 = vpow.pop %v174
    %v176 = vadd.f32 %v175, 2.0
    %v177 = vmul.f32 %v175, %v176
    %v178 = vmul.f32 %v170, %v177
    %v179 = vadd.f32 %v177, 2.0
    %v180 = vrcp.pop %v179
    %v181 = vmul.f32 %v178, %v180
    %vm182 = vcmp.gt.f32.partialorder %v170, 20.0
    %v183 = vsel %vm182, %v170, %v181
    %v184 = vld [vmem:[%s3] sm:$0x3]
    %v185 = vld [vmem:[%s4] sm:$0x3]
    %v187 = vsel %vm51, %v184, 0
    %vm189 = vcmask 1045504
    %v191 = vsel %vm189, %v183, 0
    %193 = vmatprep.subr.mxu0 0.0
    %194 = vmatpush1.msra.mxu0 0.0
    %195 = vmatprep.subr.mxu0 0.0
    %196 = vmatpush1.msra.mxu0 0.0
    %197 = vmatprep.subr.mxu0 0.0
    %198 = vmatpush1.msra.mxu0 0.0
    %199 = vmatprep.subr.mxu0 0.0
    %200 = vmatpush1.msra.mxu0 0.0
    %201 = vmatprep.subr.mxu0 0.0
    %202 = vmatpush1.msra.mxu0 0.0
    %203 = vmatprep.subr.mxu0 0.0
    %204 = vmatpush1.msra.mxu0 0.0
    %205 = vmatprep.subr.mxu0 0.0
    %206 = vmatpush1.msra.mxu0 0.0
    %207 = vmatprep.subr.mxu0 0.0
    %208 = vmatpush1.msra.mxu0 0.0
    %209 = vmatprep.subr.mxu0 0.0
    %210 = vmatpush1.msra.mxu0 0.0
    %211 = vmatprep.subr.mxu0 0.0
    %212 = vmatpush1.msra.mxu0 0.0
    %213 = vmatprep.subr.mxu0 0.0
    %214 = vmatpush1.msra.mxu0 0.0
    %215 = vmatprep.subr.mxu0 0.0
    %216 = vmatpush1.msra.mxu0 0.0
    %217 = vmatprep.subr.mxu0 0.0
    %218 = vmatpush1.msra.mxu0 0.0
    %219 = vmatprep.subr.mxu0 0.0
    %220 = vmatpush1.msra.mxu0 0.0
    %221 = vmatprep.subr.mxu0 0.0
    %222 = vmatpush1.msra.mxu0 0.0
    %223 = vmatprep.subr.mxu0 0.0
    %224 = vmatpush1.msra.mxu0 %v191
    %225 = vmatprep.subr.mxu0 0.0
    %226 = vmatpush2.msra.mxu0 0.0
    %227 = vmatprep.subr.mxu0 0.0
    %228 = vmatpush2.msra.mxu0 0.0
    %229 = vmatprep.subr.mxu0 0.0
    %230 = vmatpush2.msra.mxu0 0.0
    %231 = vmatprep.subr.mxu0 0.0
    %232 = vmatpush2.msra.mxu0 0.0
    %233 = vmatprep.subr.mxu0 0.0
    %234 = vmatpush2.msra.mxu0 0.0
    %235 = vmatprep.subr.mxu0 0.0
    %236 = vmatpush2.msra.mxu0 0.0
    %237 = vmatprep.subr.mxu0 0.0
    %238 = vmatpush2.msra.mxu0 0.0
    %239 = vmatprep.subr.mxu0 0.0
    %240 = vmatpush2.msra.mxu0 0.0
    %241 = vmatprep.subr.mxu0 0.0
    %242 = vmatpush2.msra.mxu0 0.0
    %243 = vmatprep.subr.mxu0 0.0
    %244 = vmatpush2.msra.mxu0 0.0
    %245 = vmatprep.subr.mxu0 0.0
    %246 = vmatpush2.msra.mxu0 0.0
    %247 = vmatprep.subr.mxu0 0.0
    %248 = vmatpush2.msra.mxu0 0.0
    %249 = vmatprep.subr.mxu0 0.0
    %250 = vmatpush2.msra.mxu0 0.0
    %251 = vmatprep.subr.mxu0 0.0
    %252 = vmatpush2.msra.mxu0 0.0
    %253 = vmatprep.subr.mxu0 0.0
    %254 = vmatpush2.msra.mxu0 0.0
    %255 = vmatprep.subr.mxu0 0.0
    %256 = vmatpush2.msra.mxu0 0.0
    %257 = vmatprep.mubr.f32.mxu0 0.0
    %258 = vmatmul.mubr.f32.gmra.mxu0 %v187
    %v259 = vpop.f32.mrf.mxu0
    %v260 = vadd.f32 %v185, %v259
    %v261 = vpop.f32.mrf.mxu0
    %262 = vdwg.mxu0
    %v263 = vand.u32 2147483647, %v260
    %v264 = vsub.f32 0.0, %v263
    %v265 = vmul.f32 %v264, 1.442695
    %v266 = vpow.pop %v265
    %v267 = vadd.f32 %v266, 1.0
    %v268 = vrcp.pop %v267
    %vm269 = vcmp.ge.f32.partialorder %v260, 0.0
    %v270 = vmul.f32 %v266, %v268
    %v271 = vsel %vm269, %v268, %v270
    %272 = vst [vmem:[#allocation5] sm:$0x3] %v271
    // Predicated region
    $region26: #{_forward_impl.1} parent=1 // pred_check
      _
    $region27: #{_forward_impl.1} parent=1 // pred_check_branch
      %274 = sbr.rel (0) target = $region29
    $region28: #{_forward_impl.1} parent=1 // pred_region
      %s276 = ssub.s32 32, 32
      %277 = vsyncadd [#allocation4], %s276
      %s279 = sshll.u32 [#allocation5], 4
      %s280 = int_to_ptr.vmem [resolvable:$true] %s279
      %282 = dma.vmem_to_hbm [thread:$0]  %s280, 32, %s5, [#allocation4]
    $region29: #{_forward_impl.1} parent=1 // pred_fallthru
      _
    // Predicated region
    $region30: #{_forward_impl.1} parent=1 // pred_check
      _
    $region31: #{_forward_impl.1} parent=1 // pred_check_branch
      %284 = sbr.rel (0) target = $region33
    $region32: #{_forward_impl.1} parent=1 // pred_region
      %285 = dma.done [#allocation4], 32
    $region33: #{_forward_impl.1} parent=1 // pred_fallthru
      _
    %286 = vsyncpa [#allocation3], 1
    %287 = vsyncpa [#allocation4], 1

</llo_original>
